<compile_context>
chip_gen: v7x
topology: tpu7x:2x2x1
jax: 0.10.0
libtpu: 0.0.40
codegen_flags: <defaults>
</compile_context>

<pallas_src>
import jax
import jax.numpy as jnp
from jax.experimental import pallas as pl
from jax.experimental.pallas import tpu as pltpu

INPUT_SIZE = 4
HIDDEN_SIZE = 10
NUM_CLASSES = 3

# Small padded feature dims (blocks with last dim == full array extent are
# legal even when < 128): hidden 10 -> 16, classes 3 -> 8.
HIDDEN_PAD = 16
CLASS_PAD = 8


def _round_up(x: int, m: int) -> int:
    return ((x + m - 1) // m) * m


def _cdiv(a: int, b: int) -> int:
    return -(-a // b)


def _mlp_kernel(x_ref, w1_ref, b1_ref, w2_ref, b2_ref, o_ref):
    # fc1: (tb, 4) @ (4, 16) + (1, 16), then ReLU.
    h = jnp.dot(x_ref[...], w1_ref[...], preferred_element_type=jnp.float32)
    h = jnp.maximum(h + b1_ref[...], 0.0)
    # fc2: (tb, 16) @ (16, 8) + (1, 8).
    out = jnp.dot(h, w2_ref[...], preferred_element_type=jnp.float32)
    o_ref[...] = (out + b2_ref[...]).astype(o_ref.dtype)


def prepare_params(w1, b1, w2, b2):
    """One-time prep: fold PyTorch-layout transpose + zero padding into storage.

    w1: (hidden, in), b1: (hidden,), w2: (classes, hidden), b2: (classes,).
    """
    w1_t = jnp.zeros((INPUT_SIZE, HIDDEN_PAD), jnp.float32).at[:, :HIDDEN_SIZE].set(w1.T)
    b1_p = jnp.zeros((1, HIDDEN_PAD), jnp.float32).at[:, :HIDDEN_SIZE].set(b1)
    w2_t = jnp.zeros((HIDDEN_PAD, CLASS_PAD), jnp.float32).at[:HIDDEN_SIZE, :NUM_CLASSES].set(w2.T)
    b2_p = jnp.zeros((1, CLASS_PAD), jnp.float32).at[:, :NUM_CLASSES].set(b2)
    return w1_t, b1_p, w2_t, b2_p


def two_layer_net(x, params, *, tile_b: int = 4096):
    """x: (B, INPUT_SIZE) float32; params from prepare_params.

    Returns (B, NUM_CLASSES) float32.
    """
    w1_t, b1_p, w2_t, b2_p = params
    B = x.shape[0]

    # Balanced batch tiles (multiple of 8 sublanes).  Force >= 2 grid steps for
    # non-tiny batches so the "parallel" axis shards over v7x's two TCs.
    n_tiles = _cdiv(B, tile_b)
    if B >= 16:
        n_tiles = max(n_tiles, 2)
    tb = _round_up(_cdiv(B, n_tiles), 8)
    n_tiles = _cdiv(B, tb)
    b_pad = n_tiles * tb
    if b_pad != B:
        # Balanced tiles keep this to < 8 dead rows per tile (zero in the
        # common multiple-of-8 case), so this copy is negligible.
        x = jnp.pad(x, ((0, b_pad - B), (0, 0)))

    # Honest (unpadded) cost hints for XLA's scheduler.
    flops = 2 * B * (INPUT_SIZE * HIDDEN_SIZE + HIDDEN_SIZE * NUM_CLASSES)
    bytes_accessed = 4 * (
        B * (INPUT_SIZE + CLASS_PAD)
        + w1_t.size + b1_p.size + w2_t.size + b2_p.size
    )

    out = pl.pallas_call(
        _mlp_kernel,
        out_shape=jax.ShapeDtypeStruct((b_pad, CLASS_PAD), jnp.float32),
        grid=(n_tiles,),
        in_specs=[
            # x: streamed per batch tile (last dim == full extent -> legal).
            pl.BlockSpec((tb, INPUT_SIZE), lambda i: (i, 0)),
            # Weights / biases: constant block index -> stay VMEM-resident
            # across all grid steps (~1.3 KiB total).
            pl.BlockSpec((INPUT_SIZE, HIDDEN_PAD), lambda i: (0, 0)),
            pl.BlockSpec((1, HIDDEN_PAD), lambda i: (0, 0)),
            pl.BlockSpec((HIDDEN_PAD, CLASS_PAD), lambda i: (0, 0)),
            pl.BlockSpec((1, CLASS_PAD), lambda i: (0, 0)),
        ],
        # Narrow (8-wide) output tile: full-extent last dim, minimal HBM writeback.
        out_specs=pl.BlockSpec((tb, CLASS_PAD), lambda i: (i, 0)),
        compiler_params=pltpu.CompilerParams(
            dimension_semantics=("parallel",),
        ),
        cost_estimate=pl.CostEstimate(
            flops=flops, transcendentals=0, bytes_accessed=bytes_accessed
        ),
    )(x, w1_t, b1_p, w2_t, b2_p)

    # Slice off padded rows / columns.
    return out[:B, :NUM_CLASSES]


def init_params(key):
    """Deterministic init mimicking nn.Linear default (uniform +/- 1/sqrt(fan_in))."""
    k1, k2, k3, k4 = jax.random.split(key, 4)
    bound1 = 1.0 / jnp.sqrt(INPUT_SIZE)
    bound2 = 1.0 / jnp.sqrt(HIDDEN_SIZE)
    w1 = jax.random.uniform(k1, (HIDDEN_SIZE, INPUT_SIZE), jnp.float32, -bound1, bound1)
    b1 = jax.random.uniform(k2, (HIDDEN_SIZE,), jnp.float32, -bound1, bound1)
    w2 = jax.random.uniform(k3, (NUM_CLASSES, HIDDEN_SIZE), jnp.float32, -bound2, bound2)
    b2 = jax.random.uniform(k4, (NUM_CLASSES,), jnp.float32, -bound2, bound2)
    return w1, b1, w2, b2


def _reference(x, w1, b1, w2, b2):
    hp = jax.lax.Precision.HIGHEST
    h = jnp.maximum(jnp.dot(x, w1.T, precision=hp) + b1, 0.0)
    return jnp.dot(h, w2.T, precision=hp) + b2


if __name__ == "__main__":
    key = jax.random.PRNGKey(0)
    kx, kx2, kp = jax.random.split(key, 3)

    w1, b1, w2, b2 = init_params(kp)
    params = prepare_params(w1, b1, w2, b2)  # one-time transpose + pad

    # Small batch (single grid step).
    batch = 8
    x = jax.random.normal(kx, (batch, INPUT_SIZE), jnp.float32)
    out = jax.block_until_ready(two_layer_net(x, params))
    ref = _reference(x, w1, b1, w2, b2)
    assert out.shape == (batch, NUM_CLASSES)
    assert jnp.allclose(out, ref, atol=1e-3, rtol=1e-3)

    # Larger, ragged batch: exercises balanced multi-tile grid (2 steps for
    # v7x dual-TC sharding) and the < 8-row tail padding path.
    big_batch = 1000
    xb = jax.random.normal(kx2, (big_batch, INPUT_SIZE), jnp.float32)
    outb = jax.block_until_ready(two_layer_net(xb, params))
    refb = _reference(xb, w1, b1, w2, b2)
    assert outb.shape == (big_batch, NUM_CLASSES)
    assert jnp.allclose(outb, refb, atol=1e-3, rtol=1e-3)

    print("KERNEL_OK")
</pallas_src>

<mosaic_0001>
module attributes {stable_mosaic.version = 11 : i64} {
  func.func @_mlp_kernel(%arg0: i32, %arg1: memref<8x4xf32, #tpu.memory_space<vmem>>, %arg2: memref<4x16xf32, #tpu.memory_space<vmem>>, %arg3: memref<1x16xf32, #tpu.memory_space<vmem>>, %arg4: memref<16x8xf32, #tpu.memory_space<vmem>>, %arg5: memref<1x8xf32, #tpu.memory_space<vmem>>, %arg6: memref<8x8xf32, #tpu.memory_space<vmem>>) attributes {dimension_semantics = [#tpu.dimension_semantics<parallel>], iteration_bounds = array<i64: 1>, scalar_prefetch = 0 : i64, scratch_operands = 0 : i64, tpu.core_type = #tpu.core_type<tc>, window_params = [{transform_indices = @transform_0, window_bounds = array<i64: 8, 4>}, {pipeline_mode = #tpu.pipeline_mode<synchronous>, transform_indices = @transform_1, window_bounds = array<i64: 4, 16>}, {pipeline_mode = #tpu.pipeline_mode<synchronous>, transform_indices = @transform_2, window_bounds = array<i64: 1, 16>}, {pipeline_mode = #tpu.pipeline_mode<synchronous>, transform_indices = @transform_3, window_bounds = array<i64: 16, 8>}, {pipeline_mode = #tpu.pipeline_mode<synchronous>, transform_indices = @transform_4, window_bounds = array<i64: 1, 8>}, {transform_indices = @transform_5, window_bounds = array<i64: 8, 8>}]} {
    %c0 = arith.constant 0 : index
    %c0_0 = arith.constant 0 : index
    %0 = vector.load %arg1[%c0, %c0_0] : memref<8x4xf32, #tpu.memory_space<vmem>>, vector<8x4xf32>
    %c0_1 = arith.constant 0 : index
    %c0_2 = arith.constant 0 : index
    %1 = vector.load %arg2[%c0_1, %c0_2] : memref<4x16xf32, #tpu.memory_space<vmem>>, vector<4x16xf32>
    %cst = arith.constant dense<0.000000e+00> : vector<8x16xf32>
    %2 = tpu.matmul %0, %1, %cst {dimension_numbers = #tpu.dot_dimension_numbers<[1], [0], [0], [1], [0, 0, 1, 1], [], []>} : vector<8x4xf32>, vector<4x16xf32>, vector<8x16xf32> -> vector<8x16xf32>
    %c0_3 = arith.constant 0 : index
    %c0_4 = arith.constant 0 : index
    %3 = vector.load %arg3[%c0_3, %c0_4] : memref<1x16xf32, #tpu.memory_space<vmem>>, vector<1x16xf32>
    %4 = vector.broadcast %3 : vector<1x16xf32> to vector<8x16xf32>
    %5 = arith.addf %2, %4 : vector<8x16xf32>
    %cst_5 = arith.constant 0.000000e+00 : f32
    %6 = vector.broadcast %cst_5 : f32 to vector<8x16xf32>
    %7 = arith.maximumf %5, %6 : vector<8x16xf32>
    %c0_6 = arith.constant 0 : index
    %c0_7 = arith.constant 0 : index
    %8 = vector.load %arg4[%c0_6, %c0_7] : memref<16x8xf32, #tpu.memory_space<vmem>>, vector<16x8xf32>
    %cst_8 = arith.constant dense<0.000000e+00> : vector<8x8xf32>
    %9 = tpu.matmul %7, %8, %cst_8 {dimension_numbers = #tpu.dot_dimension_numbers<[1], [0], [0], [1], [0, 0, 1, 1], [], []>} : vector<8x16xf32>, vector<16x8xf32>, vector<8x8xf32> -> vector<8x8xf32>
    %c0_9 = arith.constant 0 : index
    %c0_10 = arith.constant 0 : index
    %10 = vector.load %arg5[%c0_9, %c0_10] : memref<1x8xf32, #tpu.memory_space<vmem>>, vector<1x8xf32>
    %11 = vector.broadcast %10 : vector<1x8xf32> to vector<8x8xf32>
    %12 = arith.addf %9, %11 : vector<8x8xf32>
    %c0_11 = arith.constant 0 : index
    %c0_12 = arith.constant 0 : index
    %13 = vector.load %arg6[%c0_11, %c0_12] : memref<8x8xf32, #tpu.memory_space<vmem>>, vector<8x8xf32>
    tpu.vector_store %arg6[%c0_11, %c0_12], %12 {strides = array<i32>} : memref<8x8xf32, #tpu.memory_space<vmem>>, vector<8x8xf32>,
    return
  }
  func.func @transform_0(%arg0: i32) -> (i32, i32) {
    %c0_i32 = arith.constant 0 : i32
    %c0_i32_0 = arith.constant 0 : i32
    return %arg0, %c0_i32 : i32, i32
  }
  func.func @transform_1(%arg0: i32) -> (i32, i32) {
    %c0_i32 = arith.constant 0 : i32
    %c0_i32_0 = arith.constant 0 : i32
    %c0_i32_1 = arith.constant 0 : i32
    return %c0_i32, %c0_i32_0 : i32, i32
  }
  func.func @transform_2(%arg0: i32) -> (i32, i32) {
    %c0_i32 = arith.constant 0 : i32
    %c0_i32_0 = arith.constant 0 : i32
    %c0_i32_1 = arith.constant 0 : i32
    return %c0_i32, %c0_i32_0 : i32, i32
  }
  func.func @transform_3(%arg0: i32) -> (i32, i32) {
    %c0_i32 = arith.constant 0 : i32
    %c0_i32_0 = arith.constant 0 : i32
    %c0_i32_1 = arith.constant 0 : i32
    return %c0_i32, %c0_i32_0 : i32, i32
  }
  func.func @transform_4(%arg0: i32) -> (i32, i32) {
    %c0_i32 = arith.constant 0 : i32
    %c0_i32_0 = arith.constant 0 : i32
    %c0_i32_1 = arith.constant 0 : i32
    return %c0_i32, %c0_i32_0 : i32, i32
  }
  func.func @transform_5(%arg0: i32) -> (i32, i32) {
    %c0_i32 = arith.constant 0 : i32
    %c0_i32_0 = arith.constant 0 : i32
    return %arg0, %c0_i32 : i32, i32
  }
}

</mosaic_0001>

<llo_original>
// kernel: tpu_custom_call.1
$region0: #{tpu_custom_call.1}
  #allocation0 [shape = 'u32[]', space=smem, size = 0x4, offset = 0x4, fixed_abs, tag = 'smem constant byte address 0x4 - core index']
  #allocation1 [shape = 'u32[144,128]{1,0:T(1,128)}', space=vmem, size = 0x12000, scoped, tag = 'internal scratch']
  %s0 = inlined_call_operand.vmem [shape: f32[8,4], index: 0, kind: input, shape index: {}]
  %s1 = inlined_call_operand.vmem [shape: f32[4,16], index: 1, kind: input, shape index: {}]
  %s2 = inlined_call_operand.vmem [shape: f32[1,16], index: 2, kind: input, shape index: {}]
  %s3 = inlined_call_operand.vmem [shape: f32[16,8], index: 3, kind: input, shape index: {}]
  %s4 = inlined_call_operand.vmem [shape: f32[1,8], index: 4, kind: input, shape index: {}]
  %s5 = inlined_call_operand.hbm [shape: f32[8,8], index: 5, kind: output, shape index: {}]
  %s6 = sld [smem:[#allocation0]]
  $region30: #{tpu_custom_call.1} parent=0
    _
  %s8 = ssub.s32 1, %s6
  %s9 = scalar_select 0, %s8, %s6
  $region1: #{tpu_custom_call.1} parent=0
    #allocation2 [shape = 'u8[4096]{0}', space=vmem, size = 0x1000, scoped, tag = 'output window, operand 0, single buffered']
    #allocation3 [shape = 's32[1]{0}', space=sflag, size = 0x4, scoped, tag = 'scoped memory for tpu_custom_call.1']
    %10 = vsyncpa [#allocation3], 0
    // Predicated region
    $region2: #{tpu_custom_call.1} parent=1 // pred_check
      _
    $region3: #{tpu_custom_call.1} parent=1 // pred_check_branch
      %12 = sbr.rel (0) target = $region5
    $region4: #{tpu_custom_call.1} parent=1 // pred_region
      _
    $region5: #{tpu_custom_call.1} parent=1 // pred_fallthru
      _
    // Predicated region
    $region6: #{tpu_custom_call.1} parent=1 // pred_check
      _
    $region7: #{tpu_custom_call.1} parent=1 // pred_check_branch
      %14 = sbr.rel (0) target = $region9
    $region8: #{tpu_custom_call.1} parent=1 // pred_region
      _
    $region9: #{tpu_custom_call.1} parent=1 // pred_fallthru
      _
    // Predicated region
    $region10: #{tpu_custom_call.1} parent=1 // pred_check
      _
    $region11: #{tpu_custom_call.1} parent=1 // pred_check_branch
      %16 = sbr.rel (0) target = $region13
    $region12: #{tpu_custom_call.1} parent=1 // pred_region
      _
    $region13: #{tpu_custom_call.1} parent=1 // pred_fallthru
      _
    // Predicated region
    $region14: #{tpu_custom_call.1} parent=1 // pred_check
      _
    $region15: #{tpu_custom_call.1} parent=1 // pred_check_branch
      %18 = sbr.rel (0) target = $region17
    $region16: #{tpu_custom_call.1} parent=1 // pred_region
      _
    $region17: #{tpu_custom_call.1} parent=1 // pred_fallthru
      _
    // Predicated region
    $region18: #{tpu_custom_call.1} parent=1 // pred_check
      _
    $region19: #{tpu_custom_call.1} parent=1 // pred_check_branch
      %20 = sbr.rel (0) target = $region21
    $region20: #{tpu_custom_call.1} parent=1 // pred_region
      _
    $region21: #{tpu_custom_call.1} parent=1 // pred_fallthru
      _
    %v21 = vld [vmem:[%s0] sm:$0xff]
    %v22 = vld [vmem:[%s1] sm:$0xf]
    %v23 = vld [vmem:[%s2] sm:$0x1]
    %v25 = vlaneseq
    %v26 = vshrl.u32 %v25, 7
    %v27 = vsub.s32 0, %v26
    %v28 = vrot.slane %v23, %v27
    %vm30 = vcmask 31744
    %v32 = vsel %vm30, %v21, 0
    %vm34 = vcmask 1043456
    %v36 = vsel %vm34, %v22, 0
    %38 = vmatprep.subr.mxu0 0.0
    %39 = vmatpush1.msra.mxu0 %v36
    %40 = vmatprep.subr.mxu0 0.0
    %41 = vmatpush1.msra.mxu0 0.0
    %42 = vmatprep.subr.mxu0 0.0
    %43 = vmatpush1.msra.mxu0 0.0
    %44 = vmatprep.subr.mxu0 0.0
    %45 = vmatpush1.msra.mxu0 0.0
    %46 = vmatprep.subr.mxu0 0.0
    %47 = vmatpush1.msra.mxu0 0.0
    %48 = vmatprep.subr.mxu0 0.0
    %49 = vmatpush1.msra.mxu0 0.0
    %50 = vmatprep.subr.mxu0 0.0
    %51 = vmatpush1.msra.mxu0 0.0
    %52 = vmatprep.subr.mxu0 0.0
    %53 = vmatpush1.msra.mxu0 0.0
    %54 = vmatprep.subr.mxu0 0.0
    %55 = vmatpush1.msra.mxu0 0.0
    %56 = vmatprep.subr.mxu0 0.0
    %57 = vmatpush1.msra.mxu0 0.0
    %58 = vmatprep.subr.mxu0 0.0
    %59 = vmatpush1.msra.mxu0 0.0
    %60 = vmatprep.subr.mxu0 0.0
    %61 = vmatpush1.msra.mxu0 0.0
    %62 = vmatprep.subr.mxu0 0.0
    %63 = vmatpush1.msra.mxu0 0.0
    %64 = vmatprep.subr.mxu0 0.0
    %65 = vmatpush1.msra.mxu0 0.0
    %66 = vmatprep.subr.mxu0 0.0
    %67 = vmatpush1.msra.mxu0 0.0
    %68 = vmatprep.subr.mxu0 0.0
    %69 = vmatpush1.msra.mxu0 0.0
    %70 = vmatprep.subr.mxu0 0.0
    %71 = vmatpush1.msra.mxu0 0.0
    %72 = vmatprep.subr.mxu0 0.0
    %73 = vmatpush1.msra.mxu0 0.0
    %74 = vmatprep.subr.mxu0 0.0
    %75 = vmatpush1.msra.mxu0 0.0
    %76 = vmatprep.subr.mxu0 0.0
    %77 = vmatpush1.msra.mxu0 0.0
    %78 = vmatprep.subr.mxu0 0.0
    %79 = vmatpush1.msra.mxu0 0.0
    %80 = vmatprep.subr.mxu0 0.0
    %81 = vmatpush1.msra.mxu0 0.0
    %82 = vmatprep.subr.mxu0 0.0
    %83 = vmatpush1.msra.mxu0 0.0
    %84 = vmatprep.subr.mxu0 0.0
    %85 = vmatpush1.msra.mxu0 0.0
    %86 = vmatprep.subr.mxu0 0.0
    %87 = vmatpush1.msra.mxu0 0.0
    %88 = vmatprep.subr.mxu0 0.0
    %89 = vmatpush1.msra.mxu0 0.0
    %90 = vmatprep.subr.mxu0 0.0
    %91 = vmatpush1.msra.mxu0 0.0
    %92 = vmatprep.subr.mxu0 0.0
    %93 = vmatpush1.msra.mxu0 0.0
    %94 = vmatprep.subr.mxu0 0.0
    %95 = vmatpush1.msra.mxu0 0.0
    %96 = vmatprep.subr.mxu0 0.0
    %97 = vmatpush1.msra.mxu0 0.0
    %98 = vmatprep.subr.mxu0 0.0
    %99 = vmatpush1.msra.mxu0 0.0
    %100 = vmatprep.subr.mxu0 0.0
    %101 = vmatpush1.msra.mxu0 0.0
    %102 = vmatprep.mubr.f32.mxu0 0.0
    %103 = vmatmul.mubr.f32.gmra.mrb[0].mxu0 %v32
    %v104 = vpop.f32.mrb[0].mxu0
    %v105 = vadd.f32 %v28, %v104
    %v106 = vpop.f32.mrb[0].mxu0
    %107 = vdwg.mxu0
    %v108 = vmax.f32 %v105, 0.0
    %v109 = vld [vmem:[%s3] sm:$0xff]
    %v110 = vld [vmem:[%s3 + $0x8] sm:$0xff]
    %v111 = vld [vmem:[%s4] sm:$0x1]
    %v113 = vlaneseq
    %v114 = vshrl.u32 %v113, 7
    %v115 = vsub.s32 0, %v114
    %v116 = vrot.slane %v111, %v115
    %vm118 = vcmask 130048
    %v120 = vsel %vm118, %v108, 0
    %122 = vmatprep.subr.mxu0 0.0
    %123 = vmatpush1.msra.mxu0 %v109
    %124 = vmatprep.subr.mxu0 0.0
    %125 = vmatpush1.msra.mxu0 %v110
    %126 = vmatprep.subr.mxu0 0.0
    %127 = vmatpush1.msra.mxu0 0.0
    %128 = vmatprep.subr.mxu0 0.0
    %129 = vmatpush1.msra.mxu0 0.0
    %130 = vmatprep.subr.mxu0 0.0
    %131 = vmatpush1.msra.mxu0 0.0
    %132 = vmatprep.subr.mxu0 0.0
    %133 = vmatpush1.msra.mxu0 0.0
    %134 = vmatprep.subr.mxu0 0.0
    %135 = vmatpush1.msra.mxu0 0.0
    %136 = vmatprep.subr.mxu0 0.0
    %137 = vmatpush1.msra.mxu0 0.0
    %138 = vmatprep.subr.mxu0 0.0
    %139 = vmatpush1.msra.mxu0 0.0
    %140 = vmatprep.subr.mxu0 0.0
    %141 = vmatpush1.msra.mxu0 0.0
    %142 = vmatprep.subr.mxu0 0.0
    %143 = vmatpush1.msra.mxu0 0.0
    %144 = vmatprep.subr.mxu0 0.0
    %145 = vmatpush1.msra.mxu0 0.0
    %146 = vmatprep.subr.mxu0 0.0
    %147 = vmatpush1.msra.mxu0 0.0
    %148 = vmatprep.subr.mxu0 0.0
    %149 = vmatpush1.msra.mxu0 0.0
    %150 = vmatprep.subr.mxu0 0.0
    %151 = vmatpush1.msra.mxu0 0.0
    %152 = vmatprep.subr.mxu0 0.0
    %153 = vmatpush1.msra.mxu0 0.0
    %154 = vmatprep.subr.mxu0 0.0
    %155 = vmatpush1.msra.mxu0 0.0
    %156 = vmatprep.subr.mxu0 0.0
    %157 = vmatpush1.msra.mxu0 0.0
    %158 = vmatprep.subr.mxu0 0.0
    %159 = vmatpush1.msra.mxu0 0.0
    %160 = vmatprep.subr.mxu0 0.0
    %161 = vmatpush1.msra.mxu0 0.0
    %162 = vmatprep.subr.mxu0 0.0
    %163 = vmatpush1.msra.mxu0 0.0
    %164 = vmatprep.subr.mxu0 0.0
    %165 = vmatpush1.msra.mxu0 0.0
    %166 = vmatprep.subr.mxu0 0.0
    %167 = vmatpush1.msra.mxu0 0.0
    %168 = vmatprep.subr.mxu0 0.0
    %169 = vmatpush1.msra.mxu0 0.0
    %170 = vmatprep.subr.mxu0 0.0
    %171 = vmatpush1.msra.mxu0 0.0
    %172 = vmatprep.subr.mxu0 0.0
    %173 = vmatpush1.msra.mxu0 0.0
    %174 = vmatprep.subr.mxu0 0.0
    %175 = vmatpush1.msra.mxu0 0.0
    %176 = vmatprep.subr.mxu0 0.0
    %177 = vmatpush1.msra.mxu0 0.0
    %178 = vmatprep.subr.mxu0 0.0
    %179 = vmatpush1.msra.mxu0 0.0
    %180 = vmatprep.subr.mxu0 0.0
    %181 = vmatpush1.msra.mxu0 0.0
    %182 = vmatprep.subr.mxu0 0.0
    %183 = vmatpush1.msra.mxu0 0.0
    %184 = vmatprep.subr.mxu0 0.0
    %185 = vmatpush1.msra.mxu0 0.0
    %186 = vmatprep.mubr.f32.mxu0 0.0
    %187 = vmatmul.mubr.f32.gmra.mrb[0].mxu0 %v120
    %v188 = vpop.f32.mrb[0].mxu0
    %v189 = vadd.f32 %v116, %v188
    %v190 = vpop.f32.mrb[0].mxu0
    %191 = vdwg.mxu0
    %vm192 = vcmask 64512
    %193 = vst.msk [vmem:[#allocation2] sm:$0xff] %vm192, %v189
    // Predicated region
    $region22: #{tpu_custom_call.1} parent=1 // pred_check
      _
    $region23: #{tpu_custom_call.1} parent=1 // pred_check_branch
      %195 = sbr.rel (0) target = $region25
    $region24: #{tpu_custom_call.1} parent=1 // pred_region
      %s197 = ssub.s32 128, 128
      %198 = vsyncadd [#allocation3], %s197
      %s200 = sshll.u32 [#allocation2], 4
      %s201 = int_to_ptr.vmem [resolvable:$true] %s200
      %203 = dma.vmem_to_hbm [thread:$0]  %s201, 128, %s5, [#allocation3]
    $region25: #{tpu_custom_call.1} parent=1 // pred_fallthru
      _
    // Predicated region
    $region26: #{tpu_custom_call.1} parent=1 // pred_check
      _
    $region27: #{tpu_custom_call.1} parent=1 // pred_check_branch
      %205 = sbr.rel (0) target = $region29
    $region28: #{tpu_custom_call.1} parent=1 // pred_region
      %206 = dma.done [#allocation3], 128
    $region29: #{tpu_custom_call.1} parent=1 // pred_fallthru
      _
    %207 = vsyncpa [#allocation3], 1

</llo_original>
